<compile_context>
chip_gen: v7x
topology: tpu7x:2x2x1
jax: 0.10.0
libtpu: 0.0.40
codegen_flags: <defaults>
</compile_context>

<pallas_src>
import functools

import jax
import jax.numpy as jnp
from jax import lax
from jax.experimental import pallas as pl
from jax.experimental.pallas import tpu as pltpu

_EPS = 1e-6  # torch.nn.PairwiseDistance default eps (added to the difference)


def _round_up(x, m):
    return ((x + m - 1) // m) * m


def _pick_edge_tile(E, budget_edges):
    """Largest 128-aligned edge tile within budget, >= 2 grid steps when possible."""
    e_pad128 = _round_up(max(E, 1), 128)
    tile = max(128, (int(budget_edges) // 128) * 128)
    tile = min(tile, e_pad128)
    # Keep at least 2 grid steps when there is enough work so the "parallel"
    # edge axis actually gives both v7x TensorCores tiles.
    if e_pad128 >= 256 and e_pad128 // tile < 2:
        tile = _round_up((e_pad128 + 1) // 2, 128)
    return tile


def _fused_dist_kernel(idx0_ref, idx1_ref, zt_ref, o_ref, *, apply_sigmoid):
    # idx0_ref/idx1_ref: [1, TE] int32 edge endpoints (lane-dense).
    # zt_ref:            [D, N_pad] z^T, VMEM-resident across grid steps.
    # o_ref:             [1, TE] output block (lane-dense store).
    n_pad = zt_ref.shape[1]
    te = idx0_ref.shape[1]
    zdt = zt_ref.dtype

    # One-hot difference matrix built on the VPU, consumed by the idle MXU:
    # sel[n, e] = +1 if n == i0[e], -1 if n == i1[e], else 0.
    iota = lax.broadcasted_iota(jnp.int32, (n_pad, te), 0)
    sel = (iota == idx0_ref[...]).astype(zdt) - (iota == idx1_ref[...]).astype(zdt)

    # diff^T[D, TE] = z^T[D, N_pad] @ sel[N_pad, TE]  (exact: sel is {-1,0,+1};
    # HIGHEST keeps full f32 accuracy for f32 latents, no-op for bf16).
    diff_t = jnp.dot(zt_ref[...], sel,
                     preferred_element_type=jnp.float32,
                     precision=lax.Precision.HIGHEST) + _EPS      # [D, TE] f32

    dist = jnp.sqrt(jnp.sum(diff_t * diff_t, axis=0, keepdims=True))  # [1, TE]
    val = -dist
    if apply_sigmoid:
        val = jax.nn.sigmoid(val)
    o_ref[...] = val.astype(o_ref.dtype)


def _gathered_dist_kernel(x1_ref, x2_ref, o_ref, *, apply_sigmoid):
    # x1_ref/x2_ref: [D, TE] gathered endpoints in z.dtype (features on
    # sublanes, edges on lanes); math in f32 (eps underflows in bf16).
    diff = x1_ref[...].astype(jnp.float32) - x2_ref[...].astype(jnp.float32) + _EPS
    dist = jnp.sqrt(jnp.sum(diff * diff, axis=0, keepdims=True))       # [1, TE]
    val = -dist
    if apply_sigmoid:
        val = jax.nn.sigmoid(val)
    o_ref[...] = val.astype(o_ref.dtype)


def distance_decoder_forward(z, edge_index, sigmoid=True, *,
                             max_fused_nodes=1024, max_edge_tile=8192):
    """Pallas implementation of DistanceDecoder.forward."""
    N, D = z.shape
    E = edge_index.shape[1]
    out_dtype = z.dtype

    if E == 0:  # guard: avoids tile=0 / divide-by-zero
        return jnp.zeros((0,), dtype=out_dtype)

    itemsize = jnp.dtype(z.dtype).itemsize
    # Clamp indices to [0, N): matches jnp.take semantics and guarantees the
    # in-kernel one-hot columns are well-defined (no silent OOB behaviour).
    idx = jnp.clip(edge_index.astype(jnp.int32), 0, N - 1)
    idx0, idx1 = idx[0], idx[1]

    n_pad = _round_up(N, 128)
    use_fused = (n_pad <= max_fused_nodes) and (D * n_pad * itemsize <= (4 << 20))

    compiler_params = pltpu.CompilerParams(dimension_semantics=("parallel",))

    if use_fused:
        # Fused-gather path: z^T resident in VMEM, per-edge HBM traffic is just
        # 8 B of indices + the output element.  Tile bounded by the [N_pad, TE]
        # one-hot intermediate (<= 1 MiB) and the [D, TE] f32 diff (<= 2 MiB).
        budget = min((1 << 20) // (4 * n_pad), (2 << 20) // (4 * D), max_edge_tile)
        tile = _pick_edge_tile(E, budget)
        e_pad = _round_up(E, tile)

        idx0p = jnp.pad(idx0, (0, e_pad - E)).reshape(1, e_pad)
        idx1p = jnp.pad(idx1, (0, e_pad - E)).reshape(1, e_pad)
        # One-time [N, D] -> [D, N_pad] transpose (cost N*D, independent of E).
        zt = jnp.pad(z, ((0, n_pad - N), (0, 0))).T

        cost = pl.CostEstimate(
            flops=int(2 * D * n_pad * e_pad + 4 * D * e_pad),
            transcendentals=int(e_pad),
            bytes_accessed=int(D * n_pad * itemsize + 2 * e_pad * 4
                               + e_pad * itemsize),
        )
        out = pl.pallas_call(
            functools.partial(_fused_dist_kernel, apply_sigmoid=sigmoid),
            out_shape=jax.ShapeDtypeStruct((1, e_pad), out_dtype),
            grid=(e_pad // tile,),
            in_specs=[
                pl.BlockSpec((1, tile), lambda i: (0, i)),      # idx0
                pl.BlockSpec((1, tile), lambda i: (0, i)),      # idx1
                pl.BlockSpec((D, n_pad), lambda i: (0, 0)),     # resident z^T
            ],
            out_specs=pl.BlockSpec((1, tile), lambda i: (0, i)),
            compiler_params=compiler_params,
            cost_estimate=cost,
        )(idx0p, idx1p, zt)
        return out[0, :E]

    # Large-N fallback: external XLA gather, but in z.dtype (no f32 upcast) and
    # from a pre-transposed z so the gather output is already lane-dense
    # [D, E_pad] (no transpose copy at the pallas_call boundary).
    # TODO(synk): replace with an in-kernel manual row-DMA gather
    # (memory_space=pl.ANY + pltpu.make_async_copy) to drop this HBM round-trip.
    budget = (4 << 20) // max(2 * D * itemsize, 1)   # ~2 MiB per input block
    tile = _pick_edge_tile(E, min(budget, max_edge_tile))
    e_pad = _round_up(E, tile)

    idx0p = jnp.pad(idx0, (0, e_pad - E))            # pad with valid index 0
    idx1p = jnp.pad(idx1, (0, e_pad - E))
    zt = z.T                                         # one-time [N, D] -> [D, N]
    x1t = jnp.take(zt, idx0p, axis=1)                # [D, e_pad], z.dtype
    x2t = jnp.take(zt, idx1p, axis=1)                # [D, e_pad], z.dtype

    cost = pl.CostEstimate(
        flops=int(4 * D * e_pad),
        transcendentals=int(e_pad),
        bytes_accessed=int(2 * D * e_pad * itemsize + e_pad * itemsize),
    )
    # VMEM: 2 inputs x 2 pipeline buffers x (D*tile*itemsize) <= ~8 MiB by
    # construction of `budget`, under v5e's 16 MiB scoped default for any D.
    out = pl.pallas_call(
        functools.partial(_gathered_dist_kernel, apply_sigmoid=sigmoid),
        out_shape=jax.ShapeDtypeStruct((1, e_pad), out_dtype),
        grid=(e_pad // tile,),
        in_specs=[
            pl.BlockSpec((D, tile), lambda i: (0, i)),
            pl.BlockSpec((D, tile), lambda i: (0, i)),
        ],
        out_specs=pl.BlockSpec((1, tile), lambda i: (0, i)),
        compiler_params=compiler_params,
        cost_estimate=cost,
    )(x1t, x2t)
    return out[0, :E]


def _reference_forward(z, edge_index, sigmoid=True):
    # Pure-JAX reference mirroring torch.nn.PairwiseDistance + sigmoid.
    diff = (z[edge_index[0]].astype(jnp.float32)
            - z[edge_index[1]].astype(jnp.float32) + _EPS)
    val = -jnp.sqrt(jnp.sum(diff * diff, axis=-1))
    val = jax.nn.sigmoid(val) if sigmoid else val
    return val.astype(z.dtype)


if __name__ == "__main__":
    key = jax.random.PRNGKey(0)
    k_z, k_e, k_e2 = jax.random.split(key, 3)

    # Small shapes consistent with the module: N nodes, D latent dim, E edges.
    N, D, E = 16, 32, 8
    z = jax.random.normal(k_z, (N, D), dtype=jnp.float32)
    edge_index = jax.random.randint(k_e, (2, E), 0, N, dtype=jnp.int32)

    # Fused (MXU one-hot gather) path, sigmoid=True.
    out = jax.block_until_ready(distance_decoder_forward(z, edge_index, sigmoid=True))
    ref = _reference_forward(z, edge_index, sigmoid=True)
    assert out.shape == (E,)
    assert jnp.allclose(out, ref, atol=1e-5, rtol=1e-5)

    # sigmoid=False path.
    raw = jax.block_until_ready(distance_decoder_forward(z, edge_index, sigmoid=False))
    assert jnp.allclose(raw, _reference_forward(z, edge_index, sigmoid=False),
                        atol=1e-5, rtol=1e-5)

    # Multi-tile grid + padded tail (E=300 -> two 256-wide tiles, 212 padded lanes).
    E2 = 300
    edge_index2 = jax.random.randint(k_e2, (2, E2), 0, N, dtype=jnp.int32)
    out2 = jax.block_until_ready(distance_decoder_forward(z, edge_index2, sigmoid=True))
    assert out2.shape == (E2,)
    assert jnp.allclose(out2, _reference_forward(z, edge_index2, sigmoid=True),
                        atol=1e-5, rtol=1e-5)

    # Large-N fallback path (external gather, no upcast / no materialized transpose).
    out3 = jax.block_until_ready(
        distance_decoder_forward(z, edge_index2, sigmoid=True, max_fused_nodes=0))
    assert jnp.allclose(out3, _reference_forward(z, edge_index2, sigmoid=True),
                        atol=1e-5, rtol=1e-5)

    # bf16 latents: DMA stays bf16, math stays f32 inside the kernel.
    zb = z.astype(jnp.bfloat16)
    outb = jax.block_until_ready(distance_decoder_forward(zb, edge_index2, sigmoid=True))
    refb = _reference_forward(zb, edge_index2, sigmoid=True)
    assert outb.dtype == jnp.bfloat16
    assert jnp.allclose(outb.astype(jnp.float32), refb.astype(jnp.float32),
                        atol=2e-2, rtol=2e-2)

    # E == 0 guard.
    empty = distance_decoder_forward(z, jnp.zeros((2, 0), jnp.int32))
    assert empty.shape == (0,)

    print("KERNEL_OK")
</pallas_src>

<mosaic_0001>
module attributes {stable_mosaic.version = 11 : i64} {
  func.func @_fused_dist_kernel(%arg0: i32, %arg1: memref<1x128xi32, #tpu.memory_space<vmem>>, %arg2: memref<1x128xi32, #tpu.memory_space<vmem>>, %arg3: memref<32x128xf32, #tpu.memory_space<vmem>>, %arg4: memref<1x128xf32, #tpu.memory_space<vmem>>) attributes {dimension_semantics = [#tpu.dimension_semantics<parallel>], iteration_bounds = array<i64: 1>, scalar_prefetch = 0 : i64, scratch_operands = 0 : i64, tpu.core_type = #tpu.core_type<tc>, window_params = [{transform_indices = @transform_0, window_bounds = array<i64: 1, 128>}, {transform_indices = @transform_1, window_bounds = array<i64: 1, 128>}, {pipeline_mode = #tpu.pipeline_mode<synchronous>, transform_indices = @transform_2, window_bounds = array<i64: 32, 128>}, {transform_indices = @transform_3, window_bounds = array<i64: 1, 128>}]} {
    %0 = tpu.iota {dimensions = array<i32: 0>} : vector<128x128xi32>
    %c0 = arith.constant 0 : index
    %c0_0 = arith.constant 0 : index
    %1 = vector.load %arg1[%c0, %c0_0] : memref<1x128xi32, #tpu.memory_space<vmem>>, vector<1x128xi32>
    %2 = vector.broadcast %1 : vector<1x128xi32> to vector<128x128xi32>
    %3 = arith.cmpi eq, %0, %2 : vector<128x128xi32>
    %4 = arith.extui %3 : vector<128x128xi1> to vector<128x128xi32>
    %5 = arith.sitofp %4 : vector<128x128xi32> to vector<128x128xf32>
    %c0_1 = arith.constant 0 : index
    %c0_2 = arith.constant 0 : index
    %6 = vector.load %arg2[%c0_1, %c0_2] : memref<1x128xi32, #tpu.memory_space<vmem>>, vector<1x128xi32>
    %7 = vector.broadcast %6 : vector<1x128xi32> to vector<128x128xi32>
    %8 = arith.cmpi eq, %0, %7 : vector<128x128xi32>
    %9 = arith.extui %8 : vector<128x128xi1> to vector<128x128xi32>
    %10 = arith.sitofp %9 : vector<128x128xi32> to vector<128x128xf32>
    %11 = arith.subf %5, %10 : vector<128x128xf32>
    %c0_3 = arith.constant 0 : index
    %c0_4 = arith.constant 0 : index
    %12 = vector.load %arg3[%c0_3, %c0_4] : memref<32x128xf32, #tpu.memory_space<vmem>>, vector<32x128xf32>
    %cst = arith.constant dense<0.000000e+00> : vector<32x128xf32>
    %13 = tpu.matmul %12, %11, %cst {dimension_numbers = #tpu.dot_dimension_numbers<[1], [0], [0], [1], [0, 0, 1, 1], [], []>, precision = #tpu.contract_precision<fp32>} : vector<32x128xf32>, vector<128x128xf32>, vector<32x128xf32> -> vector<32x128xf32>
    %cst_5 = arith.constant 9.99999997E-7 : f32
    %14 = vector.broadcast %cst_5 : f32 to vector<32x128xf32>
    %15 = arith.addf %13, %14 : vector<32x128xf32>
    %16 = arith.mulf %15, %15 : vector<32x128xf32>
    %cst_6 = arith.constant dense<0.000000e+00> : vector<128xf32>
    %17 = vector.multi_reduction <add>, %16, %cst_6 [0] : vector<32x128xf32> to vector<128xf32>
    %18 = vector.shape_cast %17 : vector<128xf32> to vector<1x128xf32>
    %19 = math.sqrt %18 : vector<1x128xf32>
    %cst_7 = arith.constant 0.000000e+00 : f32
    %20 = vector.broadcast %cst_7 : f32 to vector<1x128xf32>
    %21 = arith.subf %20, %19 : vector<1x128xf32>
    %22 = arith.negf %21 : vector<1x128xf32>
    %23 = math.exp %22 : vector<1x128xf32>
    %cst_8 = arith.constant 1.000000e+00 : f32
    %24 = vector.broadcast %cst_8 : f32 to vector<1x128xf32>
    %25 = arith.addf %24, %23 : vector<1x128xf32>
    %26 = arith.divf %24, %25 : vector<1x128xf32>
    %c0_9 = arith.constant 0 : index
    %c0_10 = arith.constant 0 : index
    %27 = vector.load %arg4[%c0_9, %c0_10] : memref<1x128xf32, #tpu.memory_space<vmem>>, vector<1x128xf32>
    tpu.vector_store %arg4[%c0_9, %c0_10], %26 {strides = array<i32>} : memref<1x128xf32, #tpu.memory_space<vmem>>, vector<1x128xf32>,
    return
  }
  func.func @transform_0(%arg0: i32) -> (i32, i32) {
    %c0_i32 = arith.constant 0 : i32
    %c0_i32_0 = arith.constant 0 : i32
    return %c0_i32, %arg0 : i32, i32
  }
  func.func @transform_1(%arg0: i32) -> (i32, i32) {
    %c0_i32 = arith.constant 0 : i32
    %c0_i32_0 = arith.constant 0 : i32
    return %c0_i32, %arg0 : i32, i32
  }
  func.func @transform_2(%arg0: i32) -> (i32, i32) {
    %c0_i32 = arith.constant 0 : i32
    %c0_i32_0 = arith.constant 0 : i32
    %c0_i32_1 = arith.constant 0 : i32
    return %c0_i32, %c0_i32_0 : i32, i32
  }
  func.func @transform_3(%arg0: i32) -> (i32, i32) {
    %c0_i32 = arith.constant 0 : i32
    %c0_i32_0 = arith.constant 0 : i32
    return %c0_i32, %arg0 : i32, i32
  }
}

</mosaic_0001>

<llo_original>
// kernel: tpu_custom_call.1
$region0: #{tpu_custom_call.1}
  #allocation0 [shape = 'u32[]', space=smem, size = 0x4, offset = 0x4, fixed_abs, tag = 'smem constant byte address 0x4 - core index']
  #allocation1 [shape = 'u32[144,128]{1,0:T(1,128)}', space=vmem, size = 0x12000, scoped, tag = 'internal scratch']
  %s0 = inlined_call_operand.hbm [shape: s32[1,128], index: 0, kind: input, shape index: {}]
  %s1 = inlined_call_operand.vmem [shape: s32[1,128], index: 1, kind: input, shape index: {}]
  %s2 = inlined_call_operand.hbm [shape: f32[32,128], index: 2, kind: input, shape index: {}]
  %s3 = inlined_call_operand.hbm [shape: f32[1,128], index: 3, kind: output, shape index: {}]
  %s4 = sld [smem:[#allocation0]]
  $region30: #{tpu_custom_call.1} parent=0
    _
  %s6 = ssub.s32 1, %s4
  %s7 = scalar_select 0, %s6, %s4
  $region1: #{tpu_custom_call.1} parent=0
    #allocation2 [shape = 'u8[512]{0}', space=vmem, size = 0x400, scoped, tag = 'input window, operand 0, single buffered']
    #allocation3 [shape = 's32[1]{0}', space=sflag, size = 0x4, scoped, tag = 'scoped memory for tpu_custom_call.1']
    #allocation4 [shape = 's32[1]{0}', space=sflag, size = 0x4, scoped, tag = 'scoped memory for tpu_custom_call.1']
    #allocation5 [shape = 'u8[16384]{0}', space=vmem, size = 0x4000, scoped, tag = 'input window, operand 2, single buffered']
    #allocation6 [shape = 's32[1]{0}', space=sflag, size = 0x4, scoped, tag = 'scoped memory for tpu_custom_call.1']
    #allocation7 [shape = 'u8[512]{0}', space=vmem, size = 0x400, scoped, tag = 'output window, operand 0, single buffered']
    %8 = vsyncpa [#allocation3], 0
    %9 = vsyncpa [#allocation6], 0
    %10 = vsyncpa [#allocation4], 0
    // Predicated region
    $region2: #{tpu_custom_call.1} parent=1 // pred_check
      _
    $region3: #{tpu_custom_call.1} parent=1 // pred_check_branch
      %12 = sbr.rel (0) target = $region5
    $region4: #{tpu_custom_call.1} parent=1 // pred_region
      %s14 = ssub.s32 16, 16
      %15 = vsyncadd [#allocation3], %s14
      %s17 = sshll.u32 [#allocation2], 4
      %s18 = int_to_ptr.vmem [resolvable:$true] %s17
      %20 = dma.hbm_to_vmem [thread:$0]  %s0, 16, %s18, [#allocation3]
    $region5: #{tpu_custom_call.1} parent=1 // pred_fallthru
      _
    // Predicated region
    $region6: #{tpu_custom_call.1} parent=1 // pred_check
      _
    $region7: #{tpu_custom_call.1} parent=1 // pred_check_branch
      %22 = sbr.rel (0) target = $region9
    $region8: #{tpu_custom_call.1} parent=1 // pred_region
      _
    $region9: #{tpu_custom_call.1} parent=1 // pred_fallthru
      _
    // Predicated region
    $region10: #{tpu_custom_call.1} parent=1 // pred_check
      _
    $region11: #{tpu_custom_call.1} parent=1 // pred_check_branch
      %24 = sbr.rel (0) target = $region13
    $region12: #{tpu_custom_call.1} parent=1 // pred_region
      %s26 = ssub.s32 512, 512
      %27 = vsyncadd [#allocation6], %s26
      %s28 = sshll.u32 [#allocation5], 4
      %s29 = int_to_ptr.vmem [resolvable:$true] %s28
      %34 = dma.hbm_to_vmem [thread:$0]  %s2, 512, %s29, [#allocation6], 128, 128, 8
    $region13: #{tpu_custom_call.1} parent=1 // pred_fallthru
      _
    // Predicated region
    $region14: #{tpu_custom_call.1} parent=1 // pred_check
      _
    $region15: #{tpu_custom_call.1} parent=1 // pred_check_branch
      %36 = sbr.rel (0) target = $region17
    $region16: #{tpu_custom_call.1} parent=1 // pred_region
      %37 = dma.done [#allocation3], 16
    $region17: #{tpu_custom_call.1} parent=1 // pred_fallthru
      _
    // Predicated region
    $region18: #{tpu_custom_call.1} parent=1 // pred_check
      _
    $region19: #{tpu_custom_call.1} parent=1 // pred_check_branch
      %39 = sbr.rel (0) target = $region21
    $region20: #{tpu_custom_call.1} parent=1 // pred_region
      %40 = dma.done [#allocation6], 512
    $region21: #{tpu_custom_call.1} parent=1 // pred_fallthru
      _
    %v41 = vlaneseq
    %v42 = vshrl.u32 %v41, 7
    %v43 = vadd.s32 %v42, 8
    %v44 = vadd.s32 %v42, 16
    %v45 = vadd.s32 %v42, 24
    %v46 = vadd.s32 %v42, 32
    %v47 = vadd.s32 %v42, 40
    %v48 = vadd.s32 %v42, 48
    %v49 = vadd.s32 %v42, 56
    %v50 = vadd.s32 %v42, 64
    %v51 = vadd.s32 %v42, 72
    %v52 = vadd.s32 %v42, 80
    %v53 = vadd.s32 %v42, 88
    %v54 = vadd.s32 %v42, 96
    %v55 = vadd.s32 %v42, 104
    %v56 = vadd.s32 %v42, 112
    %v57 = vadd.s32 %v42, 120
    %v58 = vld [vmem:[#allocation2] sm:$0x1]
    %v59 = vlaneseq
    %v60 = vshrl.u32 %v59, 7
    %v61 = vsub.s32 0, %v60
    %v62 = vrot.slane %v58, %v61
    %vm63 = vcmp.eq.s32.totalorder %v42, %v62
    %vm64 = vcmp.eq.s32.totalorder %v43, %v62
    %vm65 = vcmp.eq.s32.totalorder %v44, %v62
    %vm66 = vcmp.eq.s32.totalorder %v45, %v62
    %vm67 = vcmp.eq.s32.totalorder %v46, %v62
    %vm68 = vcmp.eq.s32.totalorder %v47, %v62
    %vm69 = vcmp.eq.s32.totalorder %v48, %v62
    %vm70 = vcmp.eq.s32.totalorder %v49, %v62
    %vm71 = vcmp.eq.s32.totalorder %v50, %v62
    %vm72 = vcmp.eq.s32.totalorder %v51, %v62
    %vm73 = vcmp.eq.s32.totalorder %v52, %v62
    %vm74 = vcmp.eq.s32.totalorder %v53, %v62
    %vm75 = vcmp.eq.s32.totalorder %v54, %v62
    %vm76 = vcmp.eq.s32.totalorder %v55, %v62
    %vm77 = vcmp.eq.s32.totalorder %v56, %v62
    %vm78 = vcmp.eq.s32.totalorder %v57, %v62
    %v79 = vsel %vm63, 1, 0
    %v80 = vsel %vm64, 1, 0
    %v81 = vsel %vm65, 1, 0
    %v82 = vsel %vm66, 1, 0
    %v83 = vsel %vm67, 1, 0
    %v84 = vsel %vm68, 1, 0
    %v85 = vsel %vm69, 1, 0
    %v86 = vsel %vm70, 1, 0
    %v87 = vsel %vm71, 1, 0
    %v88 = vsel %vm72, 1, 0
    %v89 = vsel %vm73, 1, 0
    %v90 = vsel %vm74, 1, 0
    %v91 = vsel %vm75, 1, 0
    %v92 = vsel %vm76, 1, 0
    %v93 = vsel %vm77, 1, 0
    %v94 = vsel %vm78, 1, 0
    %v95 = vcvt.s32.f32 %v79
    %v96 = vcvt.s32.f32 %v80
    %v97 = vcvt.s32.f32 %v81
    %v98 = vcvt.s32.f32 %v82
    %v99 = vcvt.s32.f32 %v83
    %v100 = vcvt.s32.f32 %v84
    %v101 = vcvt.s32.f32 %v85
    %v102 = vcvt.s32.f32 %v86
    %v103 = vcvt.s32.f32 %v87
    %v104 = vcvt.s32.f32 %v88
    %v105 = vcvt.s32.f32 %v89
    %v106 = vcvt.s32.f32 %v90
    %v107 = vcvt.s32.f32 %v91
    %v108 = vcvt.s32.f32 %v92
    %v109 = vcvt.s32.f32 %v93
    %v110 = vcvt.s32.f32 %v94
    %v111 = vld [vmem:[%s1] sm:$0x1]
    %v112 = vlaneseq
    %v113 = vshrl.u32 %v112, 7
    %v114 = vsub.s32 0, %v113
    %v115 = vrot.slane %v111, %v114
    %vm116 = vcmp.eq.s32.totalorder %v42, %v115
    %vm117 = vcmp.eq.s32.totalorder %v43, %v115
    %vm118 = vcmp.eq.s32.totalorder %v44, %v115
    %vm119 = vcmp.eq.s32.totalorder %v45, %v115
    %vm120 = vcmp.eq.s32.totalorder %v46, %v115
    %vm121 = vcmp.eq.s32.totalorder %v47, %v115
    %vm122 = vcmp.eq.s32.totalorder %v48, %v115
    %vm123 = vcmp.eq.s32.totalorder %v49, %v115
    %vm124 = vcmp.eq.s32.totalorder %v50, %v115
    %vm125 = vcmp.eq.s32.totalorder %v51, %v115
    %vm126 = vcmp.eq.s32.totalorder %v52, %v115
    %vm127 = vcmp.eq.s32.totalorder %v53, %v115
    %vm128 = vcmp.eq.s32.totalorder %v54, %v115
    %vm129 = vcmp.eq.s32.totalorder %v55, %v115
    %vm130 = vcmp.eq.s32.totalorder %v56, %v115
    %vm131 = vcmp.eq.s32.totalorder %v57, %v115
    %v132 = vsel %vm116, 1, 0
    %v133 = vsel %vm117, 1, 0
    %v134 = vsel %vm118, 1, 0
    %v135 = vsel %vm119, 1, 0
    %v136 = vsel %vm120, 1, 0
    %v137 = vsel %vm121, 1, 0
    %v138 = vsel %vm122, 1, 0
    %v139 = vsel %vm123, 1, 0
    %v140 = vsel %vm124, 1, 0
    %v141 = vsel %vm125, 1, 0
    %v142 = vsel %vm126, 1, 0
    %v143 = vsel %vm127, 1, 0
    %v144 = vsel %vm128, 1, 0
    %v145 = vsel %vm129, 1, 0
    %v146 = vsel %vm130, 1, 0
    %v147 = vsel %vm131, 1, 0
    %v148 = vcvt.s32.f32 %v132
    %v149 = vcvt.s32.f32 %v133
    %v150 = vcvt.s32.f32 %v134
    %v151 = vcvt.s32.f32 %v135
    %v152 = vcvt.s32.f32 %v136
    %v153 = vcvt.s32.f32 %v137
    %v154 = vcvt.s32.f32 %v138
    %v155 = vcvt.s32.f32 %v139
    %v156 = vcvt.s32.f32 %v140
    %v157 = vcvt.s32.f32 %v141
    %v158 = vcvt.s32.f32 %v142
    %v159 = vcvt.s32.f32 %v143
    %v160 = vcvt.s32.f32 %v144
    %v161 = vcvt.s32.f32 %v145
    %v162 = vcvt.s32.f32 %v146
    %v163 = vcvt.s32.f32 %v147
    %v164 = vsub.f32 %v95, %v148
    %v165 = vsub.f32 %v96, %v149
    %v166 = vsub.f32 %v97, %v150
    %v167 = vsub.f32 %v98, %v151
    %v168 = vsub.f32 %v99, %v152
    %v169 = vsub.f32 %v100, %v153
    %v170 = vsub.f32 %v101, %v154
    %v171 = vsub.f32 %v102, %v155
    %v172 = vsub.f32 %v103, %v156
    %v173 = vsub.f32 %v104, %v157
    %v174 = vsub.f32 %v105, %v158
    %v175 = vsub.f32 %v106, %v159
    %v176 = vsub.f32 %v107, %v160
    %v177 = vsub.f32 %v108, %v161
    %v178 = vsub.f32 %v109, %v162
    %v179 = vsub.f32 %v110, %v163
    %v180 = vld [vmem:[#allocation5] sm:$0xff]
    %v181 = vld [vmem:[#allocation5 + $0x8] sm:$0xff]
    %v182 = vld [vmem:[#allocation5 + $0x10] sm:$0xff]
    %v183 = vld [vmem:[#allocation5 + $0x18] sm:$0xff]
    %184 = vmatprep.subr.mxu0 0.0
    %v185 = vand.u32 %v164, 4294901760
    %186 = vmatpush1.msra.mxu0 %v185
    %187 = vmatprep.subr.mxu0 0.0
    %v188 = vand.u32 %v165, 4294901760
    %189 = vmatpush1.msra.mxu0 %v188
    %190 = vmatprep.subr.mxu0 0.0
    %v191 = vand.u32 %v166, 4294901760
    %192 = vmatpush1.msra.mxu0 %v191
    %193 = vmatprep.subr.mxu0 0.0
    %v194 = vand.u32 %v167, 4294901760
    %195 = vmatpush1.msra.mxu0 %v194
    %196 = vmatprep.subr.mxu0 0.0
    %v197 = vand.u32 %v168, 4294901760
    %198 = vmatpush1.msra.mxu0 %v197
    %199 = vmatprep.subr.mxu0 0.0
    %v200 = vand.u32 %v169, 4294901760
    %201 = vmatpush1.msra.mxu0 %v200
    %202 = vmatprep.subr.mxu0 0.0
    %v203 = vand.u32 %v170, 4294901760
    %204 = vmatpush1.msra.mxu0 %v203
    %205 = vmatprep.subr.mxu0 0.0
    %v206 = vand.u32 %v171, 4294901760
    %207 = vmatpush1.msra.mxu0 %v206
    %208 = vmatprep.subr.mxu0 0.0
    %v209 = vand.u32 %v172, 4294901760
    %210 = vmatpush1.msra.mxu0 %v209
    %211 = vmatprep.subr.mxu0 0.0
    %v212 = vand.u32 %v173, 4294901760
    %213 = vmatpush1.msra.mxu0 %v212
    %214 = vmatprep.subr.mxu0 0.0
    %v215 = vand.u32 %v174, 4294901760
    %216 = vmatpush1.msra.mxu0 %v215
    %217 = vmatprep.subr.mxu0 0.0
    %v218 = vand.u32 %v175, 4294901760
    %219 = vmatpush1.msra.mxu0 %v218
    %220 = vmatprep.subr.mxu0 0.0
    %v221 = vand.u32 %v176, 4294901760
    %222 = vmatpush1.msra.mxu0 %v221
    %223 = vmatprep.subr.mxu0 0.0
    %v224 = vand.u32 %v177, 4294901760
    %225 = vmatpush1.msra.mxu0 %v224
    %226 = vmatprep.subr.mxu0 0.0
    %v227 = vand.u32 %v178, 4294901760
    %228 = vmatpush1.msra.mxu0 %v227
    %229 = vmatprep.subr.mxu0 0.0
    %v230 = vand.u32 %v179, 4294901760
    %231 = vmatpush1.msra.mxu0 %v230
    %232 = vmatprep.subr.mxu0 0.0
    %233 = vmatpush1.msra.mxu0 0.0
    %234 = vmatprep.subr.mxu0 0.0
    %235 = vmatpush1.msra.mxu0 0.0
    %236 = vmatprep.subr.mxu0 0.0
    %237 = vmatpush1.msra.mxu0 0.0
    %238 = vmatprep.subr.mxu0 0.0
    %239 = vmatpush1.msra.mxu0 0.0
    %240 = vmatprep.subr.mxu0 0.0
    %241 = vmatpush1.msra.mxu0 0.0
    %242 = vmatprep.subr.mxu0 0.0
    %243 = vmatpush1.msra.mxu0 0.0
    %244 = vmatprep.subr.mxu0 0.0
    %245 = vmatpush1.msra.mxu0 0.0
    %246 = vmatprep.subr.mxu0 0.0
    %247 = vmatpush1.msra.mxu0 0.0
    %248 = vmatprep.subr.mxu0 0.0
    %249 = vmatpush1.msra.mxu0 0.0
    %250 = vmatprep.subr.mxu0 0.0
    %251 = vmatpush1.msra.mxu0 0.0
    %252 = vmatprep.subr.mxu0 0.0
    %253 = vmatpush1.msra.mxu0 0.0
    %254 = vmatprep.subr.mxu0 0.0
    %255 = vmatpush1.msra.mxu0 0.0
    %256 = vmatprep.subr.mxu0 0.0
    %257 = vmatpush1.msra.mxu0 0.0
    %258 = vmatprep.subr.mxu0 0.0
    %259 = vmatpush1.msra.mxu0 0.0
    %260 = vmatprep.subr.mxu0 0.0
    %261 = vmatpush1.msra.mxu0 0.0
    %262 = vmatprep.subr.mxu0 0.0
    %263 = vmatpush1.msra.mxu0 0.0
    %264 = vmatprep.mubr.f32.mxu0 0.0
    %v265 = vand.u32 %v180, 4294901760
    %v266 = vsub.f32 %v180, %v265
    %v267 = vand.u32 %v266, 4294901760
    %v268 = vsub.f32 %v266, %v267
    %v269 = vand.u32 %v268, 4294901760
    %270 = vmatmul.mubr.f32.gmra.mrb[0].mxu0 %v269
    %v271 = vpop.f32.mrb[0].mxu0
    %v272 = vadd.f32 1e-06, %v271
    %v273 = vpop.f32.mrb[0].mxu0
    %274 = vmatprep.mubr.f32.mxu0 0.0
    %v275 = vand.u32 %v181, 4294901760
    %v276 = vsub.f32 %v181, %v275
    %v277 = vand.u32 %v276, 4294901760
    %v278 = vsub.f32 %v276, %v277
    %v279 = vand.u32 %v278, 4294901760
    %280 = vmatmul.mubr.f32.gmra.mrb[0].mxu0 %v279
    %v281 = vpop.f32.mrb[0].mxu0
    %v282 = vadd.f32 1e-06, %v281
    %v283 = vpop.f32.mrb[0].mxu0
    %284 = vmatprep.mubr.f32.mxu0 0.0
    %v285 = vand.u32 %v182, 4294901760
    %v286 = vsub.f32 %v182, %v285
    %v287 = vand.u32 %v286, 4294901760
    %v288 = vsub.f32 %v286, %v287
    %v289 = vand.u32 %v288, 4294901760
    %290 = vmatmul.mubr.f32.gmra.mrb[0].mxu0 %v289
    %v291 = vpop.f32.mrb[0].mxu0
    %v292 = vadd.f32 1e-06, %v291
    %v293 = vpop.f32.mrb[0].mxu0
    %294 = vmatprep.mubr.f32.mxu0 0.0
    %v295 = vand.u32 %v183, 4294901760
    %v296 = vsub.f32 %v183, %v295
    %v297 = vand.u32 %v296, 4294901760
    %v298 = vsub.f32 %v296, %v297
    %v299 = vand.u32 %v298, 4294901760
    %300 = vmatmul.mubr.f32.gmra.mrb[0].mxu0 %v299
    %v301 = vpop.f32.mrb[0].mxu0
    %v302 = vadd.f32 1e-06, %v301
    %v303 = vpop.f32.mrb[0].mxu0
    %304 = vdwg.mxu0
    %305 = vmatprep.subr.mxu0 0.0
    %v306 = vand.u32 %v164, 4294901760
    %v307 = vsub.f32 %v164, %v306
    %v308 = vand.u32 %v307, 4294901760
    %v309 = vsub.f32 %v307, %v308
    %v310 = vand.u32 %v309, 4294901760
    %311 = vmatpush1.msra.mxu0 %v310
    %312 = vmatprep.subr.mxu0 0.0
    %v313 = vand.u32 %v165, 4294901760
    %v314 = vsub.f32 %v165, %v313
    %v315 = vand.u32 %v314, 4294901760
    %v316 = vsub.f32 %v314, %v315
    %v317 = vand.u32 %v316, 4294901760
    %318 = vmatpush1.msra.mxu0 %v317
    %319 = vmatprep.subr.mxu0 0.0
    %v320 = vand.u32 %v166, 4294901760
    %v321 = vsub.f32 %v166, %v320
    %v322 = vand.u32 %v321, 4294901760
    %v323 = vsub.f32 %v321, %v322
    %v324 = vand.u32 %v323, 4294901760
    %325 = vmatpush1.msra.mxu0 %v324
    %326 = vmatprep.subr.mxu0 0.0
    %v327 = vand.u32 %v167, 4294901760
    %v328 = vsub.f32 %v167, %v327
    %v329 = vand.u32 %v328, 4294901760
    %v330 = vsub.f32 %v328, %v329
    %v331 = vand.u32 %v330, 4294901760
    %332 = vmatpush1.msra.mxu0 %v331
    %333 = vmatprep.subr.mxu0 0.0
    %v334 = vand.u32 %v168, 4294901760
    %v335 = vsub.f32 %v168, %v334
    %v336 = vand.u32 %v335, 4294901760
    %v337 = vsub.f32 %v335, %v336
    %v338 = vand.u32 %v337, 4294901760
    %339 = vmatpush1.msra.mxu0 %v338
    %340 = vmatprep.subr.mxu0 0.0
    %v341 = vand.u32 %v169, 4294901760
    %v342 = vsub.f32 %v169, %v341
    %v343 = vand.u32 %v342, 4294901760
    %v344 = vsub.f32 %v342, %v343
    %v345 = vand.u32 %v344, 4294901760
    %346 = vmatpush1.msra.mxu0 %v345
    %347 = vmatprep.subr.mxu0 0.0
    %v348 = vand.u32 %v170, 4294901760
    %v349 = vsub.f32 %v170, %v348
    %v350 = vand.u32 %v349, 4294901760
    %v351 = vsub.f32 %v349, %v350
    %v352 = vand.u32 %v351, 4294901760
    %353 = vmatpush1.msra.mxu0 %v352
    %354 = vmatprep.subr.mxu0 0.0
    %v355 = vand.u32 %v171, 4294901760
    %v356 = vsub.f32 %v171, %v355
    %v357 = vand.u32 %v356, 4294901760
    %v358 = vsub.f32 %v356, %v357
    %v359 = vand.u32 %v358, 4294901760
    %360 = vmatpush1.msra.mxu0 %v359
    %361 = vmatprep.subr.mxu0 0.0
    %v362 = vand.u32 %v172, 4294901760
    %v363 = vsub.f32 %v172, %v362
    %v364 = vand.u32 %v363, 4294901760
    %v365 = vsub.f32 %v363, %v364
    %v366 = vand.u32 %v365, 4294901760
    %367 = vmatpush1.msra.mxu0 %v366
    %368 = vmatprep.subr.mxu0 0.0
    %v369 = vand.u32 %v173, 4294901760
    %v370 = vsub.f32 %v173, %v369
    %v371 = vand.u32 %v370, 4294901760
    %v372 = vsub.f32 %v370, %v371
    %v373 = vand.u32 %v372, 4294901760
    %374 = vmatpush1.msra.mxu0 %v373
    %375 = vmatprep.subr.mxu0 0.0
    %v376 = vand.u32 %v174, 4294901760
    %v377 = vsub.f32 %v174, %v376
    %v378 = vand.u32 %v377, 4294901760
    %v379 = vsub.f32 %v377, %v378
    %v380 = vand.u32 %v379, 4294901760
    %381 = vmatpush1.msra.mxu0 %v380
    %382 = vmatprep.subr.mxu0 0.0
    %v383 = vand.u32 %v175, 4294901760
    %v384 = vsub.f32 %v175, %v383
    %v385 = vand.u32 %v384, 4294901760
    %v386 = vsub.f32 %v384, %v385
    %v387 = vand.u32 %v386, 4294901760
    %388 = vmatpush1.msra.mxu0 %v387
    %389 = vmatprep.subr.mxu0 0.0
    %v390 = vand.u32 %v176, 4294901760
    %v391 = vsub.f32 %v176, %v390
    %v392 = vand.u32 %v391, 4294901760
    %v393 = vsub.f32 %v391, %v392
    %v394 = vand.u32 %v393, 4294901760
    %395 = vmatpush1.msra.mxu0 %v394
    %396 = vmatprep.subr.mxu0 0.0
    %v397 = vand.u32 %v177, 4294901760
    %v398 = vsub.f32 %v177, %v397
    %v399 = vand.u32 %v398, 4294901760
    %v400 = vsub.f32 %v398, %v399
    %v401 = vand.u32 %v400, 4294901760
    %402 = vmatpush1.msra.mxu0 %v401
    %403 = vmatprep.subr.mxu0 0.0
    %v404 = vand.u32 %v178, 4294901760
    %v405 = vsub.f32 %v178, %v404
    %v406 = vand.u32 %v405, 4294901760
    %v407 = vsub.f32 %v405, %v406
    %v408 = vand.u32 %v407, 4294901760
    %409 = vmatpush1.msra.mxu0 %v408
    %410 = vmatprep.subr.mxu0 0.0
    %v411 = vand.u32 %v179, 4294901760
    %v412 = vsub.f32 %v179, %v411
    %v413 = vand.u32 %v412, 4294901760
    %v414 = vsub.f32 %v412, %v413
    %v415 = vand.u32 %v414, 4294901760
    %416 = vmatpush1.msra.mxu0 %v415
    %417 = vmatprep.subr.mxu0 0.0
    %418 = vmatpush1.msra.mxu0 0.0
    %419 = vmatprep.subr.mxu0 0.0
    %420 = vmatpush1.msra.mxu0 0.0
    %421 = vmatprep.subr.mxu0 0.0
    %422 = vmatpush1.msra.mxu0 0.0
    %423 = vmatprep.subr.mxu0 0.0
    %424 = vmatpush1.msra.mxu0 0.0
    %425 = vmatprep.subr.mxu0 0.0
    %426 = vmatpush1.msra.mxu0 0.0
    %427 = vmatprep.subr.mxu0 0.0
    %428 = vmatpush1.msra.mxu0 0.0
    %429 = vmatprep.subr.mxu0 0.0
    %430 = vmatpush1.msra.mxu0 0.0
    %431 = vmatprep.subr.mxu0 0.0
    %432 = vmatpush1.msra.mxu0 0.0
    %433 = vmatprep.subr.mxu0 0.0
    %434 = vmatpush1.msra.mxu0 0.0
    %435 = vmatprep.subr.mxu0 0.0
    %436 = vmatpush1.msra.mxu0 0.0
    %437 = vmatprep.subr.mxu0 0.0
    %438 = vmatpush1.msra.mxu0 0.0
    %439 = vmatprep.subr.mxu0 0.0
    %440 = vmatpush1.msra.mxu0 0.0
    %441 = vmatprep.subr.mxu0 0.0
    %442 = vmatpush1.msra.mxu0 0.0
    %443 = vmatprep.subr.mxu0 0.0
    %444 = vmatpush1.msra.mxu0 0.0
    %445 = vmatprep.subr.mxu0 0.0
    %446 = vmatpush1.msra.mxu0 0.0
    %447 = vmatprep.subr.mxu0 0.0
    %448 = vmatpush1.msra.mxu0 0.0
    %449 = vmatprep.mubr.f32.mxu0 0.0
    %v450 = vand.u32 %v180, 4294901760
    %451 = vmatmul.mubr.f32.gmra.mrb[0].mxu0 %v450
    %v452 = vpop.f32.mrb[0].mxu0
    %v453 = vadd.f32 %v272, %v452
    %v454 = vpop.f32.mrb[0].mxu0
    %455 = vmatprep.mubr.f32.mxu0 0.0
    %v456 = vand.u32 %v181, 4294901760
    %457 = vmatmul.mubr.f32.gmra.mrb[0].mxu0 %v456
    %v458 = vpop.f32.mrb[0].mxu0
    %v459 = vadd.f32 %v282, %v458
    %v460 = vpop.f32.mrb[0].mxu0
    %461 = vmatprep.mubr.f32.mxu0 0.0
    %v462 = vand.u32 %v182, 4294901760
    %463 = vmatmul.mubr.f32.gmra.mrb[0].mxu0 %v462
    %v464 = vpop.f32.mrb[0].mxu0
    %v465 = vadd.f32 %v292, %v464
    %v466 = vpop.f32.mrb[0].mxu0
    %467 = vmatprep.mubr.f32.mxu0 0.0
    %v468 = vand.u32 %v183, 4294901760
    %469 = vmatmul.mubr.f32.gmra.mrb[0].mxu0 %v468
    %v470 = vpop.f32.mrb[0].mxu0
    %v471 = vadd.f32 %v302, %v470
    %v472 = vpop.f32.mrb[0].mxu0
    %473 = vdwg.mxu0
    %474 = vmatprep.subr.mxu0 0.0
    %v475 = vand.u32 %v164, 4294901760
    %v476 = vsub.f32 %v164, %v475
    %477 = vmatpush1.msra.mxu0 %v476
    %478 = vmatprep.subr.mxu0 0.0
    %v479 = vand.u32 %v165, 4294901760
    %v480 = vsub.f32 %v165, %v479
    %481 = vmatpush1.msra.mxu0 %v480
    %482 = vmatprep.subr.mxu0 0.0
    %v483 = vand.u32 %v166, 4294901760
    %v484 = vsub.f32 %v166, %v483
    %485 = vmatpush1.msra.mxu0 %v484
    %486 = vmatprep.subr.mxu0 0.0
    %v487 = vand.u32 %v167, 4294901760
    %v488 = vsub.f32 %v167, %v487
    %489 = vmatpush1.msra.mxu0 %v488
    %490 = vmatprep.subr.mxu0 0.0
    %v491 = vand.u32 %v168, 4294901760
    %v492 = vsub.f32 %v168, %v491
    %493 = vmatpush1.msra.mxu0 %v492
    %494 = vmatprep.subr.mxu0 0.0
    %v495 = vand.u32 %v169, 4294901760
    %v496 = vsub.f32 %v169, %v495
    %497 = vmatpush1.msra.mxu0 %v496
    %498 = vmatprep.subr.mxu0 0.0
    %v499 = vand.u32 %v170, 4294901760
    %v500 = vsub.f32 %v170, %v499
    %501 = vmatpush1.msra.mxu0 %v500
    %502 = vmatprep.subr.mxu0 0.0
    %v503 = vand.u32 %v171, 4294901760
    %v504 = vsub.f32 %v171, %v503
    %505 = vmatpush1.msra.mxu0 %v504
    %506 = vmatprep.subr.mxu0 0.0
    %v507 = vand.u32 %v172, 4294901760
    %v508 = vsub.f32 %v172, %v507
    %509 = vmatpush1.msra.mxu0 %v508
    %510 = vmatprep.subr.mxu0 0.0
    %v511 = vand.u32 %v173, 4294901760
    %v512 = vsub.f32 %v173, %v511
    %513 = vmatpush1.msra.mxu0 %v512
    %514 = vmatprep.subr.mxu0 0.0
    %v515 = vand.u32 %v174, 4294901760
    %v516 = vsub.f32 %v174, %v515
    %517 = vmatpush1.msra.mxu0 %v516
    %518 = vmatprep.subr.mxu0 0.0
    %v519 = vand.u32 %v175, 4294901760
    %v520 = vsub.f32 %v175, %v519
    %521 = vmatpush1.msra.mxu0 %v520
    %522 = vmatprep.subr.mxu0 0.0
    %v523 = vand.u32 %v176, 4294901760
    %v524 = vsub.f32 %v176, %v523
    %525 = vmatpush1.msra.mxu0 %v524
    %526 = vmatprep.subr.mxu0 0.0
    %v527 = vand.u32 %v177, 4294901760
    %v528 = vsub.f32 %v177, %v527
    %529 = vmatpush1.msra.mxu0 %v528
    %530 = vmatprep.subr.mxu0 0.0
    %v531 = vand.u32 %v178, 4294901760
    %v532 = vsub.f32 %v178, %v531
    %533 = vmatpush1.msra.mxu0 %v532
    %534 = vmatprep.subr.mxu0 0.0
    %v535 = vand.u32 %v179, 4294901760
    %v536 = vsub.f32 %v179, %v535
    %537 = vmatpush1.msra.mxu0 %v536
    %538 = vmatprep.subr.mxu0 0.0
    %539 = vmatpush1.msra.mxu0 0.0
    %540 = vmatprep.subr.mxu0 0.0
    %541 = vmatpush1.msra.mxu0 0.0
    %542 = vmatprep.subr.mxu0 0.0
    %543 = vmatpush1.msra.mxu0 0.0
    %544 = vmatprep.subr.mxu0 0.0
    %545 = vmatpush1.msra.mxu0 0.0
    %546 = vmatprep.subr.mxu0 0.0
    %547 = vmatpush1.msra.mxu0 0.0
    %548 = vmatprep.subr.mxu0 0.0
    %549 = vmatpush1.msra.mxu0 0.0
    %550 = vmatprep.subr.mxu0 0.0
    %551 = vmatpush1.msra.mxu0 0.0
    %552 = vmatprep.subr.mxu0 0.0
    %553 = vmatpush1.msra.mxu0 0.0
    %554 = vmatprep.subr.mxu0 0.0
    %555 = vmatpush1.msra.mxu0 0.0
    %556 = vmatprep.subr.mxu0 0.0
    %557 = vmatpush1.msra.mxu0 0.0
    %558 = vmatprep.subr.mxu0 0.0
    %559 = vmatpush1.msra.mxu0 0.0
    %560 = vmatprep.subr.mxu0 0.0
    %561 = vmatpush1.msra.mxu0 0.0
    %562 = vmatprep.subr.mxu0 0.0
    %563 = vmatpush1.msra.mxu0 0.0
    %564 = vmatprep.subr.mxu0 0.0
    %565 = vmatpush1.msra.mxu0 0.0
    %566 = vmatprep.subr.mxu0 0.0
    %567 = vmatpush1.msra.mxu0 0.0
    %568 = vmatprep.subr.mxu0 0.0
    %569 = vmatpush1.msra.mxu0 0.0
    %570 = vmatprep.mubr.f32.mxu0 0.0
    %v571 = vand.u32 %v180, 4294901760
    %v572 = vsub.f32 %v180, %v571
    %573 = vmatmul.mubr.f32.gmra.mrb[0].mxu0 %v572
    %v574 = vpop.f32.mrb[0].mxu0
    %v575 = vadd.f32 %v453, %v574
    %v576 = vpop.f32.mrb[0].mxu0
    %577 = vmatprep.mubr.f32.mxu0 0.0
    %v578 = vand.u32 %v181, 4294901760
    %v579 = vsub.f32 %v181, %v578
    %580 = vmatmul.mubr.f32.gmra.mrb[0].mxu0 %v579
    %v581 = vpop.f32.mrb[0].mxu0
    %v582 = vadd.f32 %v459, %v581
    %v583 = vpop.f32.mrb[0].mxu0
    %584 = vmatprep.mubr.f32.mxu0 0.0
    %v585 = vand.u32 %v182, 4294901760
    %v586 = vsub.f32 %v182, %v585
    %587 = vmatmul.mubr.f32.gmra.mrb[0].mxu0 %v586
    %v588 = vpop.f32.mrb[0].mxu0
    %v589 = vadd.f32 %v465, %v588
    %v590 = vpop.f32.mrb[0].mxu0
    %591 = vmatprep.mubr.f32.mxu0 0.0
    %v592 = vand.u32 %v183, 4294901760
    %v593 = vsub.f32 %v183, %v592
    %594 = vmatmul.mubr.f32.gmra.mrb[0].mxu0 %v593
    %v595 = vpop.f32.mrb[0].mxu0
    %v596 = vadd.f32 %v471, %v595
    %v597 = vpop.f32.mrb[0].mxu0
    %598 = vdwg.mxu0
    %599 = vmatprep.subr.mxu0 0.0
    %v600 = vand.u32 %v164, 4294901760
    %601 = vmatpush1.msra.mxu0 %v600
    %602 = vmatprep.subr.mxu0 0.0
    %v603 = vand.u32 %v165, 4294901760
    %604 = vmatpush1.msra.mxu0 %v603
    %605 = vmatprep.subr.mxu0 0.0
    %v606 = vand.u32 %v166, 4294901760
    %607 = vmatpush1.msra.mxu0 %v606
    %608 = vmatprep.subr.mxu0 0.0
    %v609 = vand.u32 %v167, 4294901760
    %610 = vmatpush1.msra.mxu0 %v609
    %611 = vmatprep.subr.mxu0 0.0
    %v612 = vand.u32 %v168, 4294901760
    %613 = vmatpush1.msra.mxu0 %v612
    %614 = vmatprep.subr.mxu0 0.0
    %v615 = vand.u32 %v169, 4294901760
    %616 = vmatpush1.msra.mxu0 %v615
    %617 = vmatprep.subr.mxu0 0.0
    %v618 = vand.u32 %v170, 4294901760
    %619 = vmatpush1.msra.mxu0 %v618
    %620 = vmatprep.subr.mxu0 0.0
    %v621 = vand.u32 %v171, 4294901760
    %622 = vmatpush1.msra.mxu0 %v621
    %623 = vmatprep.subr.mxu0 0.0
    %v624 = vand.u32 %v172, 4294901760
    %625 = vmatpush1.msra.mxu0 %v624
    %626 = vmatprep.subr.mxu0 0.0
    %v627 = vand.u32 %v173, 4294901760
    %628 = vmatpush1.msra.mxu0 %v627
    %629 = vmatprep.subr.mxu0 0.0
    %v630 = vand.u32 %v174, 4294901760
    %631 = vmatpush1.msra.mxu0 %v630
    %632 = vmatprep.subr.mxu0 0.0
    %v633 = vand.u32 %v175, 4294901760
    %634 = vmatpush1.msra.mxu0 %v633
    %635 = vmatprep.subr.mxu0 0.0
    %v636 = vand.u32 %v176, 4294901760
    %637 = vmatpush1.msra.mxu0 %v636
    %638 = vmatprep.subr.mxu0 0.0
    %v639 = vand.u32 %v177, 4294901760
    %640 = vmatpush1.msra.mxu0 %v639
    %641 = vmatprep.subr.mxu0 0.0
    %v642 = vand.u32 %v178, 4294901760
    %643 = vmatpush1.msra.mxu0 %v642
    %644 = vmatprep.subr.mxu0 0.0
    %v645 = vand.u32 %v179, 4294901760
    %646 = vmatpush1.msra.mxu0 %v645
    %647 = vmatprep.subr.mxu0 0.0
    %648 = vmatpush1.msra.mxu0 0.0
    %649 = vmatprep.subr.mxu0 0.0
    %650 = vmatpush1.msra.mxu0 0.0
    %651 = vmatprep.subr.mxu0 0.0
    %652 = vmatpush1.msra.mxu0 0.0
    %653 = vmatprep.subr.mxu0 0.0
    %654 = vmatpush1.msra.mxu0 0.0
    %655 = vmatprep.subr.mxu0 0.0
    %656 = vmatpush1.msra.mxu0 0.0
    %657 = vmatprep.subr.mxu0 0.0
    %658 = vmatpush1.msra.mxu0 0.0
    %659 = vmatprep.subr.mxu0 0.0
    %660 = vmatpush1.msra.mxu0 0.0
    %661 = vmatprep.subr.mxu0 0.0
    %662 = vmatpush1.msra.mxu0 0.0
    %663 = vmatprep.subr.mxu0 0.0
    %664 = vmatpush1.msra.mxu0 0.0
    %665 = vmatprep.subr.mxu0 0.0
    %666 = vmatpush1.msra.mxu0 0.0
    %667 = vmatprep.subr.mxu0 0.0
    %668 = vmatpush1.msra.mxu0 0.0
    %669 = vmatprep.subr.mxu0 0.0
    %670 = vmatpush1.msra.mxu0 0.0
    %671 = vmatprep.subr.mxu0 0.0
    %672 = vmatpush1.msra.mxu0 0.0
    %673 = vmatprep.subr.mxu0 0.0
    %674 = vmatpush1.msra.mxu0 0.0
    %675 = vmatprep.subr.mxu0 0.0
    %676 = vmatpush1.msra.mxu0 0.0
    %677 = vmatprep.subr.mxu0 0.0
    %678 = vmatpush1.msra.mxu0 0.0
    %679 = vmatprep.mubr.f32.mxu0 0.0
    %v680 = vand.u32 %v180, 4294901760
    %v681 = vsub.f32 %v180, %v680
    %v682 = vand.u32 %v681, 4294901760
    %683 = vmatmul.mubr.f32.gmra.mrb[0].mxu0 %v682
    %v684 = vpop.f32.mrb[0].mxu0
    %v685 = vadd.f32 %v575, %v684
    %v686 = vpop.f32.mrb[0].mxu0
    %687 = vmatprep.mubr.f32.mxu0 0.0
    %v688 = vand.u32 %v181, 4294901760
    %v689 = vsub.f32 %v181, %v688
    %v690 = vand.u32 %v689, 4294901760
    %691 = vmatmul.mubr.f32.gmra.mrb[0].mxu0 %v690
    %v692 = vpop.f32.mrb[0].mxu0
    %v693 = vadd.f32 %v582, %v692
    %v694 = vpop.f32.mrb[0].mxu0
    %695 = vmatprep.mubr.f32.mxu0 0.0
    %v696 = vand.u32 %v182, 4294901760
    %v697 = vsub.f32 %v182, %v696
    %v698 = vand.u32 %v697, 4294901760
    %699 = vmatmul.mubr.f32.gmra.mrb[0].mxu0 %v698
    %v700 = vpop.f32.mrb[0].mxu0
    %v701 = vadd.f32 %v589, %v700
    %v702 = vpop.f32.mrb[0].mxu0
    %703 = vmatprep.mubr.f32.mxu0 0.0
    %v704 = vand.u32 %v183, 4294901760
    %v705 = vsub.f32 %v183, %v704
    %v706 = vand.u32 %v705, 4294901760
    %707 = vmatmul.mubr.f32.gmra.mrb[0].mxu0 %v706
    %v708 = vpop.f32.mrb[0].mxu0
    %v709 = vadd.f32 %v596, %v708
    %v710 = vpop.f32.mrb[0].mxu0
    %711 = vdwg.mxu0
    %712 = vmatprep.subr.mxu0 0.0
    %v713 = vand.u32 %v164, 4294901760
    %v714 = vsub.f32 %v164, %v713
    %v715 = vand.u32 %v714, 4294901760
    %716 = vmatpush1.msra.mxu0 %v715
    %717 = vmatprep.subr.mxu0 0.0
    %v718 = vand.u32 %v165, 4294901760
    %v719 = vsub.f32 %v165, %v718
    %v720 = vand.u32 %v719, 4294901760
    %721 = vmatpush1.msra.mxu0 %v720
    %722 = vmatprep.subr.mxu0 0.0
    %v723 = vand.u32 %v166, 4294901760
    %v724 = vsub.f32 %v166, %v723
    %v725 = vand.u32 %v724, 4294901760
    %726 = vmatpush1.msra.mxu0 %v725
    %727 = vmatprep.subr.mxu0 0.0
    %v728 = vand.u32 %v167, 4294901760
    %v729 = vsub.f32 %v167, %v728
    %v730 = vand.u32 %v729, 4294901760
    %731 = vmatpush1.msra.mxu0 %v730
    %732 = vmatprep.subr.mxu0 0.0
    %v733 = vand.u32 %v168, 4294901760
    %v734 = vsub.f32 %v168, %v733
    %v735 = vand.u32 %v734, 4294901760
    %736 = vmatpush1.msra.mxu0 %v735
    %737 = vmatprep.subr.mxu0 0.0
    %v738 = vand.u32 %v169, 4294901760
    %v739 = vsub.f32 %v169, %v738
    %v740 = vand.u32 %v739, 4294901760
    %741 = vmatpush1.msra.mxu0 %v740
    %742 = vmatprep.subr.mxu0 0.0
    %v743 = vand.u32 %v170, 4294901760
    %v744 = vsub.f32 %v170, %v743
    %v745 = vand.u32 %v744, 4294901760
    %746 = vmatpush1.msra.mxu0 %v745
    %747 = vmatprep.subr.mxu0 0.0
    %v748 = vand.u32 %v171, 4294901760
    %v749 = vsub.f32 %v171, %v748
    %v750 = vand.u32 %v749, 4294901760
    %751 = vmatpush1.msra.mxu0 %v750
    %752 = vmatprep.subr.mxu0 0.0
    %v753 = vand.u32 %v172, 4294901760
    %v754 = vsub.f32 %v172, %v753
    %v755 = vand.u32 %v754, 4294901760
    %756 = vmatpush1.msra.mxu0 %v755
    %757 = vmatprep.subr.mxu0 0.0
    %v758 = vand.u32 %v173, 4294901760
    %v759 = vsub.f32 %v173, %v758
    %v760 = vand.u32 %v759, 4294901760
    %761 = vmatpush1.msra.mxu0 %v760
    %762 = vmatprep.subr.mxu0 0.0
    %v763 = vand.u32 %v174, 4294901760
    %v764 = vsub.f32 %v174, %v763
    %v765 = vand.u32 %v764, 4294901760
    %766 = vmatpush1.msra.mxu0 %v765
    %767 = vmatprep.subr.mxu0 0.0
    %v768 = vand.u32 %v175, 4294901760
    %v769 = vsub.f32 %v175, %v768
    %v770 = vand.u32 %v769, 4294901760
    %771 = vmatpush1.msra.mxu0 %v770
    %772 = vmatprep.subr.mxu0 0.0
    %v773 = vand.u32 %v176, 4294901760
    %v774 = vsub.f32 %v176, %v773
    %v775 = vand.u32 %v774, 4294901760
    %776 = vmatpush1.msra.mxu0 %v775
    %777 = vmatprep.subr.mxu0 0.0
    %v778 = vand.u32 %v177, 4294901760
    %v779 = vsub.f32 %v177, %v778
    %v780 = vand.u32 %v779, 4294901760
    %781 = vmatpush1.msra.mxu0 %v780
    %782 = vmatprep.subr.mxu0 0.0
    %v783 = vand.u32 %v178, 4294901760
    %v784 = vsub.f32 %v178, %v783
    %v785 = vand.u32 %v784, 4294901760
    %786 = vmatpush1.msra.mxu0 %v785
    %787 = vmatprep.subr.mxu0 0.0
    %v788 = vand.u32 %v179, 4294901760
    %v789 = vsub.f32 %v179, %v788
    %v790 = vand.u32 %v789, 4294901760
    %791 = vmatpush1.msra.mxu0 %v790
    %792 = vmatprep.subr.mxu0 0.0
    %793 = vmatpush1.msra.mxu0 0.0
    %794 = vmatprep.subr.mxu0 0.0
    %795 = vmatpush1.msra.mxu0 0.0
    %796 = vmatprep.subr.mxu0 0.0
    %797 = vmatpush1.msra.mxu0 0.0
    %798 = vmatprep.subr.mxu0 0.0
    %799 = vmatpush1.msra.mxu0 0.0
    %800 = vmatprep.subr.mxu0 0.0
    %801 = vmatpush1.msra.mxu0 0.0
    %802 = vmatprep.subr.mxu0 0.0
    %803 = vmatpush1.msra.mxu0 0.0
    %804 = vmatprep.subr.mxu0 0.0
    %805 = vmatpush1.msra.mxu0 0.0
    %806 = vmatprep.subr.mxu0 0.0
    %807 = vmatpush1.msra.mxu0 0.0
    %808 = vmatprep.subr.mxu0 0.0
    %809 = vmatpush1.msra.mxu0 0.0
    %810 = vmatprep.subr.mxu0 0.0
    %811 = vmatpush1.msra.mxu0 0.0
    %812 = vmatprep.subr.mxu0 0.0
    %813 = vmatpush1.msra.mxu0 0.0
    %814 = vmatprep.subr.mxu0 0.0
    %815 = vmatpush1.msra.mxu0 0.0
    %816 = vmatprep.subr.mxu0 0.0
    %817 = vmatpush1.msra.mxu0 0.0
    %818 = vmatprep.subr.mxu0 0.0
    %819 = vmatpush1.msra.mxu0 0.0
    %820 = vmatprep.subr.mxu0 0.0
    %821 = vmatpush1.msra.mxu0 0.0
    %822 = vmatprep.subr.mxu0 0.0
    %823 = vmatpush1.msra.mxu0 0.0
    %824 = vmatprep.mubr.f32.mxu0 0.0
    %v825 = vand.u32 %v180, 4294901760
    %826 = vmatmul.mubr.f32.gmra.mrb[0].mxu0 %v825
    %v827 = vpop.f32.mrb[0].mxu0
    %v828 = vadd.f32 %v685, %v827
    %v829 = vpop.f32.mrb[0].mxu0
    %830 = vmatprep.mubr.f32.mxu0 0.0
    %v831 = vand.u32 %v181, 4294901760
    %832 = vmatmul.mubr.f32.gmra.mrb[0].mxu0 %v831
    %v833 = vpop.f32.mrb[0].mxu0
    %v834 = vadd.f32 %v693, %v833
    %v835 = vpop.f32.mrb[0].mxu0
    %836 = vmatprep.mubr.f32.mxu0 0.0
    %v837 = vand.u32 %v182, 4294901760
    %838 = vmatmul.mubr.f32.gmra.mrb[0].mxu0 %v837
    %v839 = vpop.f32.mrb[0].mxu0
    %v840 = vadd.f32 %v701, %v839
    %v841 = vpop.f32.mrb[0].mxu0
    %842 = vmatprep.mubr.f32.mxu0 0.0
    %v843 = vand.u32 %v183, 4294901760
    %844 = vmatmul.mubr.f32.gmra.mrb[0].mxu0 %v843
    %v845 = vpop.f32.mrb[0].mxu0
    %v846 = vadd.f32 %v709, %v845
    %v847 = vpop.f32.mrb[0].mxu0
    %848 = vdwg.mxu0
    %849 = vmatprep.subr.mxu0 0.0
    %v850 = vand.u32 %v164, 4294901760
    %851 = vmatpush1.msra.mxu0 %v850
    %852 = vmatprep.subr.mxu0 0.0
    %v853 = vand.u32 %v165, 4294901760
    %854 = vmatpush1.msra.mxu0 %v853
    %855 = vmatprep.subr.mxu0 0.0
    %v856 = vand.u32 %v166, 4294901760
    %857 = vmatpush1.msra.mxu0 %v856
    %858 = vmatprep.subr.mxu0 0.0
    %v859 = vand.u32 %v167, 4294901760
    %860 = vmatpush1.msra.mxu0 %v859
    %861 = vmatprep.subr.mxu0 0.0
    %v862 = vand.u32 %v168, 4294901760
    %863 = vmatpush1.msra.mxu0 %v862
    %864 = vmatprep.subr.mxu0 0.0
    %v865 = vand.u32 %v169, 4294901760
    %866 = vmatpush1.msra.mxu0 %v865
    %867 = vmatprep.subr.mxu0 0.0
    %v868 = vand.u32 %v170, 4294901760
    %869 = vmatpush1.msra.mxu0 %v868
    %870 = vmatprep.subr.mxu0 0.0
    %v871 = vand.u32 %v171, 4294901760
    %872 = vmatpush1.msra.mxu0 %v871
    %873 = vmatprep.subr.mxu0 0.0
    %v874 = vand.u32 %v172, 4294901760
    %875 = vmatpush1.msra.mxu0 %v874
    %876 = vmatprep.subr.mxu0 0.0
    %v877 = vand.u32 %v173, 4294901760
    %878 = vmatpush1.msra.mxu0 %v877
    %879 = vmatprep.subr.mxu0 0.0
    %v880 = vand.u32 %v174, 4294901760
    %881 = vmatpush1.msra.mxu0 %v880
    %882 = vmatprep.subr.mxu0 0.0
    %v883 = vand.u32 %v175, 4294901760
    %884 = vmatpush1.msra.mxu0 %v883
    %885 = vmatprep.subr.mxu0 0.0
    %v886 = vand.u32 %v176, 4294901760
    %887 = vmatpush1.msra.mxu0 %v886
    %888 = vmatprep.subr.mxu0 0.0
    %v889 = vand.u32 %v177, 4294901760
    %890 = vmatpush1.msra.mxu0 %v889
    %891 = vmatprep.subr.mxu0 0.0
    %v892 = vand.u32 %v178, 4294901760
    %893 = vmatpush1.msra.mxu0 %v892
    %894 = vmatprep.subr.mxu0 0.0
    %v895 = vand.u32 %v179, 4294901760
    %896 = vmatpush1.msra.mxu0 %v895
    %897 = vmatprep.subr.mxu0 0.0
    %898 = vmatpush1.msra.mxu0 0.0
    %899 = vmatprep.subr.mxu0 0.0
    %900 = vmatpush1.msra.mxu0 0.0
    %901 = vmatprep.subr.mxu0 0.0
    %902 = vmatpush1.msra.mxu0 0.0
    %903 = vmatprep.subr.mxu0 0.0
    %904 = vmatpush1.msra.mxu0 0.0
    %905 = vmatprep.subr.mxu0 0.0
    %906 = vmatpush1.msra.mxu0 0.0
    %907 = vmatprep.subr.mxu0 0.0
    %908 = vmatpush1.msra.mxu0 0.0
    %909 = vmatprep.subr.mxu0 0.0
    %910 = vmatpush1.msra.mxu0 0.0
    %911 = vmatprep.subr.mxu0 0.0
    %912 = vmatpush1.msra.mxu0 0.0
    %913 = vmatprep.subr.mxu0 0.0
    %914 = vmatpush1.msra.mxu0 0.0
    %915 = vmatprep.subr.mxu0 0.0
    %916 = vmatpush1.msra.mxu0 0.0
    %917 = vmatprep.subr.mxu0 0.0
    %918 = vmatpush1.msra.mxu0 0.0
    %919 = vmatprep.subr.mxu0 0.0
    %920 = vmatpush1.msra.mxu0 0.0
    %921 = vmatprep.subr.mxu0 0.0
    %922 = vmatpush1.msra.mxu0 0.0
    %923 = vmatprep.subr.mxu0 0.0
    %924 = vmatpush1.msra.mxu0 0.0
    %925 = vmatprep.subr.mxu0 0.0
    %926 = vmatpush1.msra.mxu0 0.0
    %927 = vmatprep.subr.mxu0 0.0
    %928 = vmatpush1.msra.mxu0 0.0
    %929 = vmatprep.mubr.f32.mxu0 0.0
    %v930 = vand.u32 %v180, 4294901760
    %931 = vmatmul.mubr.f32.gmra.mrb[0].mxu0 %v930
    %v932 = vpop.f32.mrb[0].mxu0
    %v933 = vadd.f32 %v828, %v932
    %v934 = vpop.f32.mrb[0].mxu0
    %935 = vmatprep.mubr.f32.mxu0 0.0
    %v936 = vand.u32 %v181, 4294901760
    %937 = vmatmul.mubr.f32.gmra.mrb[0].mxu0 %v936
    %v938 = vpop.f32.mrb[0].mxu0
    %v939 = vadd.f32 %v834, %v938
    %v940 = vpop.f32.mrb[0].mxu0
    %941 = vmatprep.mubr.f32.mxu0 0.0
    %v942 = vand.u32 %v182, 4294901760
    %943 = vmatmul.mubr.f32.gmra.mrb[0].mxu0 %v942
    %v944 = vpop.f32.mrb[0].mxu0
    %v945 = vadd.f32 %v840, %v944
    %v946 = vpop.f32.mrb[0].mxu0
    %947 = vmatprep.mubr.f32.mxu0 0.0
    %v948 = vand.u32 %v183, 4294901760
    %949 = vmatmul.mubr.f32.gmra.mrb[0].mxu0 %v948
    %v950 = vpop.f32.mrb[0].mxu0
    %v951 = vadd.f32 %v846, %v950
    %v952 = vpop.f32.mrb[0].mxu0
    %953 = vdwg.mxu0
    %v954 = vmul.f32 %v933, %v933
    %v955 = vmul.f32 %v939, %v939
    %v956 = vmul.f32 %v945, %v945
    %v957 = vmul.f32 %v951, %v951
    %v958 = vadd.f32 %v954, %v955
    %v959 = vadd.f32 %v958, %v956
    %v960 = vadd.f32 %v959, %v957
    %v961 = vrot.slane %v960, 4
    %v962 = vadd.f32 %v960, %v961
    %v963 = vrot.slane %v962, 2
    %v964 = vadd.f32 %v962, %v963
    %v965 = vrot.slane %v964, 1
    %v966 = vadd.f32 %v964, %v965
    %v967 = vrsqrt.pop %v966
    %v968 = vmul.f32 %v966, %v967
    %vm969 = vcmp.eq.f32.partialorder %v966, inf
    %v970 = vsel %vm969, %v966, %v968
    %vm971 = vcmp.eq.f32.partialorder %v966, 0.0
    %v972 = vand.u32 %v966, 2147483648
    %v973 = vsel %vm971, %v972, %v970
    %v974 = vsub.f32 0.0, %v973
    %v975 = vxor.u32 %v974, 2147483648
    %v976 = vmul.f32 %v975, 1.442695
    %v977 = vpow.pop %v976
    %v978 = vadd.f32 %v977, 1.0
    %v979 = vrcp.pop %v978
    %v980 = vmul.f32 1.0, %v979
    %981 = vst [vmem:[#allocation7] sm:$0x1] %v980
    // Predicated region
    $region22: #{tpu_custom_call.1} parent=1 // pred_check
      _
    $region23: #{tpu_custom_call.1} parent=1 // pred_check_branch
      %983 = sbr.rel (0) target = $region25
    $region24: #{tpu_custom_call.1} parent=1 // pred_region
      %s985 = ssub.s32 16, 16
      %986 = vsyncadd [#allocation4], %s985
      %s988 = sshll.u32 [#allocation7], 4
      %s989 = int_to_ptr.vmem [resolvable:$true] %s988
      %991 = dma.vmem_to_hbm [thread:$0]  %s989, 16, %s3, [#allocation4]
    $region25: #{tpu_custom_call.1} parent=1 // pred_fallthru
      _
    // Predicated region
    $region26: #{tpu_custom_call.1} parent=1 // pred_check
      _
    $region27: #{tpu_custom_call.1} parent=1 // pred_check_branch
      %993 = sbr.rel (0) target = $region29
    $region28: #{tpu_custom_call.1} parent=1 // pred_region
      %994 = dma.done [#allocation4], 16
    $region29: #{tpu_custom_call.1} parent=1 // pred_fallthru
      _
    %995 = vsyncpa [#allocation3], 1
    %996 = vsyncpa [#allocation6], 1
    %997 = vsyncpa [#allocation4], 1

</llo_original>
